<compile_context>
chip_gen: v6e
topology: v6e:2x2x1
jax: 0.10.0
libtpu: 0.0.40
codegen_flags: <defaults>
</compile_context>

<pallas_src>
import functools
import math

import jax
import jax.numpy as jnp
from jax.experimental import pallas as pl
from jax.experimental.pallas import tpu as pltpu


# ----------------------------------------------------------------------------
# Kernel A: fused (folded-BN) pointwise conv as a matmul:  silu(W @ X + b)
#   X: (K, M) channel-major activations, W: (Cout, K), b: (Cout, 1)
# ----------------------------------------------------------------------------
def _mm_bias_silu_kernel(x_ref, w_ref, b_ref, o_ref):
    acc = jnp.dot(w_ref[...], x_ref[...],
                  preferred_element_type=jnp.float32,
                  precision=jax.lax.Precision.HIGHEST)
    acc = acc + b_ref[...]                         # (Cout, 1) broadcast over lanes
    o_ref[...] = (acc * (1.0 / (1.0 + jnp.exp(-acc)))).astype(o_ref.dtype)


def _pick_m_tile(m: int) -> int:
    # Prefer >=2 grid steps (v7x dual TensorCore), lane tiles multiple of 128.
    for t in (2048, 1024, 512, 256, 128):
        if m % t == 0 and m // t >= 2:
            return t
    for t in (2048, 1024, 512, 256, 128):
        if m % t == 0:
            return t
    return m


def matmul_bias_silu(xmat, w, b):
    k, m = xmat.shape
    cout = w.shape[0]
    tn = _pick_m_tile(m)
    return pl.pallas_call(
        _mm_bias_silu_kernel,
        out_shape=jax.ShapeDtypeStruct((cout, m), xmat.dtype),
        grid_spec=pltpu.PrefetchScalarGridSpec(
            num_scalar_prefetch=0,
            grid=(m // tn,),
            in_specs=[
                pl.BlockSpec((k, tn), lambda j: (0, j)),
                pl.BlockSpec((cout, k), lambda j: (0, 0)),
                pl.BlockSpec((cout, 1), lambda j: (0, 0)),
            ],
            out_specs=pl.BlockSpec((cout, tn), lambda j: (0, j)),
        ),
        compiler_params=pltpu.CompilerParams(
            dimension_semantics=("parallel",)),
    )(xmat, w, b)


# ----------------------------------------------------------------------------
# Kernel B: fused cascaded SPP maxpools (stride=1, "same" padding) + concat.
#   input  block: (Ch, 1, H, W)   output block: ((1+len(ks))*Ch, 1, H, W)
#   scratch: -inf padded plane sized for the largest kernel.
# ----------------------------------------------------------------------------
def _spp_kernel(f_ref, o_ref, pad_ref, *, ks, ch, h, w):
    cur = f_ref[...]                               # (ch, 1, h, w)
    o_ref[0:ch] = cur
    for idx, kk in enumerate(ks):
        p = (kk - 1) // 2
        hp, wp = h + 2 * p, w + 2 * p
        # -inf padded copy of the current feature map (matches PyTorch MaxPool2d)
        pad_ref[:, :, 0:hp, 0:wp] = jnp.full((ch, 1, hp, wp), -jnp.inf,
                                             dtype=pad_ref.dtype)
        pad_ref[:, :, p:p + h, p:p + w] = cur
        # separable max: rows then columns (k + k compares instead of k*k)
        acc = pad_ref[:, :, 0:h, 0:wp]
        for dy in range(1, kk):
            acc = jnp.maximum(acc, pad_ref[:, :, dy:dy + h, 0:wp])
        res = acc[:, :, :, 0:w]
        for dx in range(1, kk):
            res = jnp.maximum(res, acc[:, :, :, dx:dx + w])
        cur = res
        o_ref[(idx + 1) * ch:(idx + 2) * ch] = cur


def spp_cascade(f, kernel_sizes):
    """f: (Ch, N, H, W) -> ((1+len(ks))*Ch, N, H, W), cascaded maxpools."""
    ch, n, h, w = f.shape
    pmax = max((k - 1) // 2 for k in kernel_sizes)
    n_out = (1 + len(kernel_sizes)) * ch
    kern = functools.partial(_spp_kernel, ks=tuple(kernel_sizes), ch=ch, h=h, w=w)
    return pl.pallas_call(
        kern,
        out_shape=jax.ShapeDtypeStruct((n_out, n, h, w), f.dtype),
        grid_spec=pltpu.PrefetchScalarGridSpec(
            num_scalar_prefetch=0,
            grid=(n,),
            in_specs=[pl.BlockSpec((ch, 1, h, w), lambda b: (0, b, 0, 0))],
            out_specs=pl.BlockSpec((n_out, 1, h, w), lambda b: (0, b, 0, 0)),
            scratch_shapes=[pltpu.VMEM((ch, 1, h + 2 * pmax, w + 2 * pmax),
                                       f.dtype)],
        ),
        compiler_params=pltpu.CompilerParams(
            dimension_semantics=("parallel",)),
    )(f)


# ----------------------------------------------------------------------------
# Wrapper-side layout plumbing (plain JAX, no compute hoisting)
# ----------------------------------------------------------------------------
def im2col_3x3(xmat, n, h, w):
    """(C, N*H*W) -> (9*C, N*H*W) for a 3x3 / stride 1 / pad 1 conv."""
    c = xmat.shape[0]
    xs = xmat.reshape(c, n, h, w)
    xp = jnp.pad(xs, ((0, 0), (0, 0), (1, 1), (1, 1)))
    taps = [xp[:, :, dy:dy + h, dx:dx + w] for dy in range(3) for dx in range(3)]
    return jnp.stack(taps, axis=0).reshape(9 * c, n * h * w)


def fold_bn(w, gamma, beta, mean, var, eps=1e-5):
    """Fold inference-mode BatchNorm into conv weight + per-channel bias."""
    s = gamma / jnp.sqrt(var + eps)
    wf = w * s[:, None, None, None]
    bf = (beta - mean * s)[:, None]               # (Cout, 1)
    return wf, bf


def to_mat(wf):
    """(Cout, Cin, k, k) -> (Cout, k*k*Cin) matching im2col tap-major layout."""
    cout, cin, kh, kw = wf.shape
    if kh == 1 and kw == 1:
        return wf[:, :, 0, 0]
    return jnp.transpose(wf, (0, 2, 3, 1)).reshape(cout, kh * kw * cin)


def sppcsp_forward(x, folded, hidden, out_channels, kernel_sizes=(5, 9, 13)):
    """Pallas forward of SPPCSPLayer. x: (N, Cin, H, W) float32 (NCHW)."""
    n, cin, h, w = x.shape
    m = n * h * w
    xm = jnp.transpose(x, (1, 0, 2, 3)).reshape(cin, m)    # channel-major

    def c1(xmat, name):
        wmat, b = folded[name]
        return matmul_bias_silu(xmat, wmat, b)

    def c3(xmat, name):
        wmat, b = folded[name]
        return matmul_bias_silu(im2col_3x3(xmat, n, h, w), wmat, b)

    # pre_conv
    p = c1(xm, "pre0")
    p = c3(p, "pre1")
    p = c1(p, "pre2")

    # cascaded SPP maxpools + channel concat (single fused kernel)
    spp = spp_cascade(p.reshape(hidden, n, h, w), kernel_sizes)
    spp = spp.reshape((1 + len(kernel_sizes)) * hidden, m)

    # post / short / merge
    y1 = c1(spp, "post0")
    y1 = c3(y1, "post1")
    y2 = c1(xm, "short")
    y = jnp.concatenate([y1, y2], axis=0)
    out = c1(y, "merge")
    return jnp.transpose(out.reshape(out_channels, n, h, w), (1, 0, 2, 3))


# ----------------------------------------------------------------------------
# Pure-JAX reference (matches PyTorch forward, inference-mode BN)
# ----------------------------------------------------------------------------
def _ref_convlayer(x, p, ksz):
    w, gamma, beta, mean, var = p
    pad = (ksz - 1) // 2
    y = jax.lax.conv_general_dilated(
        x, w, window_strides=(1, 1), padding=[(pad, pad), (pad, pad)],
        dimension_numbers=("NCHW", "OIHW", "NCHW"),
        precision=jax.lax.Precision.HIGHEST)
    s = gamma / jnp.sqrt(var + 1e-5)
    b = beta - mean * s
    y = y * s[None, :, None, None] + b[None, :, None, None]
    return y * (1.0 / (1.0 + jnp.exp(-y)))


def _ref_maxpool(x, k):
    p = (k - 1) // 2
    return jax.lax.reduce_window(
        x, jnp.array(-jnp.inf, dtype=x.dtype), jax.lax.max,
        window_dimensions=(1, 1, k, k), window_strides=(1, 1, 1, 1),
        padding=[(0, 0), (0, 0), (p, p), (p, p)])


def ref_forward(x, raw, kernel_sizes=(5, 9, 13)):
    f = _ref_convlayer(x, raw["pre0"], 1)
    f = _ref_convlayer(f, raw["pre1"], 3)
    f = _ref_convlayer(f, raw["pre2"], 1)
    feats = [f]
    for k in kernel_sizes:
        feats.append(_ref_maxpool(feats[-1], k))
    cat = jnp.concatenate(feats, axis=1)
    y1 = _ref_convlayer(cat, raw["post0"], 1)
    y1 = _ref_convlayer(y1, raw["post1"], 3)
    y2 = _ref_convlayer(x, raw["short"], 1)
    y = jnp.concatenate([y1, y2], axis=1)
    return _ref_convlayer(y, raw["merge"], 1)


# ----------------------------------------------------------------------------
# Parameter construction (deterministic)
# ----------------------------------------------------------------------------
def make_conv_params(key, cout, cin, ksz):
    kw, kg, kb, km, kv = jax.random.split(key, 5)
    fan_in = cin * ksz * ksz
    w = jax.random.normal(kw, (cout, cin, ksz, ksz), jnp.float32) / math.sqrt(fan_in)
    gamma = 1.0 + 0.1 * jax.random.normal(kg, (cout,), jnp.float32)
    beta = 0.1 * jax.random.normal(kb, (cout,), jnp.float32)
    mean = 0.1 * jax.random.normal(km, (cout,), jnp.float32)
    var = 1.0 + 0.1 * jnp.abs(jax.random.normal(kv, (cout,), jnp.float32))
    return w, gamma, beta, mean, var


if __name__ == "__main__":
    N, Cin, H, W = 2, 4, 16, 16
    out_channels = 8
    expansion = 0.5
    hidden = int(2 * out_channels * expansion)          # = 8
    kernel_sizes = (5, 9, 13)

    # TODO(synk): BatchNorm is implemented in inference mode (folded running
    # stats); training-mode batch statistics are not implemented.
    layer_defs = {
        "pre0": (hidden, Cin, 1),
        "pre1": (hidden, hidden, 3),
        "pre2": (hidden, hidden, 1),
        "short": (hidden, Cin, 1),
        "post0": (hidden, (1 + len(kernel_sizes)) * hidden, 1),
        "post1": (hidden, hidden, 3),
        "merge": (out_channels, 2 * hidden, 1),
    }

    keys = jax.random.split(jax.random.PRNGKey(0), len(layer_defs) + 1)
    x = jax.random.normal(keys[0], (N, Cin, H, W), jnp.float32)

    raw = {}
    for i, (name, (co, ci, ksz)) in enumerate(layer_defs.items()):
        raw[name] = make_conv_params(keys[i + 1], co, ci, ksz)

    folded = {}
    for name, (co, ci, ksz) in layer_defs.items():
        wf, bf = fold_bn(*raw[name])
        folded[name] = (to_mat(wf), bf)

    y = sppcsp_forward(x, folded, hidden, out_channels, kernel_sizes)
    y = jax.block_until_ready(y)

    y_ref = ref_forward(x, raw, kernel_sizes)
    assert y.shape == (N, out_channels, H, W)
    err = float(jnp.max(jnp.abs(y - y_ref)))
    assert err < 1e-2, f"max abs err {err}"

    print("KERNEL_OK")
</pallas_src>

<mosaic_0001>
module attributes {stable_mosaic.version = 11 : i64} {
  func.func @_mm_bias_silu_kernel(%arg0: i32, %arg1: memref<4x256xf32, #tpu.memory_space<vmem>>, %arg2: memref<8x4xf32, #tpu.memory_space<vmem>>, %arg3: memref<8x1xf32, #tpu.memory_space<vmem>>, %arg4: memref<8x256xf32, #tpu.memory_space<vmem>>) attributes {dimension_semantics = [#tpu.dimension_semantics<parallel>], iteration_bounds = array<i64: 2>, scalar_prefetch = 0 : i64, scratch_operands = 0 : i64, tpu.core_type = #tpu.core_type<tc>, window_params = [{transform_indices = @transform_0, window_bounds = array<i64: 4, 256>}, {pipeline_mode = #tpu.pipeline_mode<synchronous>, transform_indices = @transform_1, window_bounds = array<i64: 8, 4>}, {pipeline_mode = #tpu.pipeline_mode<synchronous>, transform_indices = @transform_2, window_bounds = array<i64: 8, 1>}, {transform_indices = @transform_3, window_bounds = array<i64: 8, 256>}]} {
    %c0 = arith.constant 0 : index
    %c0_0 = arith.constant 0 : index
    %0 = vector.load %arg2[%c0, %c0_0] : memref<8x4xf32, #tpu.memory_space<vmem>>, vector<8x4xf32>
    %c0_1 = arith.constant 0 : index
    %c0_2 = arith.constant 0 : index
    %1 = vector.load %arg1[%c0_1, %c0_2] : memref<4x256xf32, #tpu.memory_space<vmem>>, vector<4x256xf32>
    %cst = arith.constant dense<0.000000e+00> : vector<8x256xf32>
    %2 = tpu.matmul %0, %1, %cst {dimension_numbers = #tpu.dot_dimension_numbers<[1], [0], [0], [1], [0, 0, 1, 1], [], []>, precision = #tpu.contract_precision<fp32>} : vector<8x4xf32>, vector<4x256xf32>, vector<8x256xf32> -> vector<8x256xf32>
    %c0_3 = arith.constant 0 : index
    %c0_4 = arith.constant 0 : index
    %3 = vector.load %arg3[%c0_3, %c0_4] : memref<8x1xf32, #tpu.memory_space<vmem>>, vector<8x1xf32>
    %4 = vector.broadcast %3 : vector<8x1xf32> to vector<8x256xf32>
    %5 = arith.addf %2, %4 : vector<8x256xf32>
    %cst_5 = arith.constant 0.000000e+00 : f32
    %6 = vector.broadcast %cst_5 : f32 to vector<8x256xf32>
    %7 = arith.subf %6, %5 : vector<8x256xf32>
    %8 = math.exp %7 : vector<8x256xf32>
    %cst_6 = arith.constant 1.000000e+00 : f32
    %9 = vector.broadcast %cst_6 : f32 to vector<8x256xf32>
    %10 = arith.addf %9, %8 : vector<8x256xf32>
    %cst_7 = arith.constant 1.000000e+00 : f32
    %11 = vector.broadcast %cst_7 : f32 to vector<8x256xf32>
    %12 = arith.divf %11, %10 : vector<8x256xf32>
    %13 = arith.mulf %5, %12 : vector<8x256xf32>
    %c0_8 = arith.constant 0 : index
    %c0_9 = arith.constant 0 : index
    %14 = vector.load %arg4[%c0_8, %c0_9] : memref<8x256xf32, #tpu.memory_space<vmem>>, vector<8x256xf32>
    tpu.vector_store %arg4[%c0_8, %c0_9], %13 {strides = array<i32>} : memref<8x256xf32, #tpu.memory_space<vmem>>, vector<8x256xf32>,
    return
  }
  func.func @transform_0(%arg0: i32) -> (i32, i32) {
    %c0_i32 = arith.constant 0 : i32
    %c0_i32_0 = arith.constant 0 : i32
    return %c0_i32, %arg0 : i32, i32
  }
  func.func @transform_1(%arg0: i32) -> (i32, i32) {
    %c0_i32 = arith.constant 0 : i32
    %c0_i32_0 = arith.constant 0 : i32
    %c0_i32_1 = arith.constant 0 : i32
    return %c0_i32, %c0_i32_0 : i32, i32
  }
  func.func @transform_2(%arg0: i32) -> (i32, i32) {
    %c0_i32 = arith.constant 0 : i32
    %c0_i32_0 = arith.constant 0 : i32
    %c0_i32_1 = arith.constant 0 : i32
    return %c0_i32, %c0_i32_0 : i32, i32
  }
  func.func @transform_3(%arg0: i32) -> (i32, i32) {
    %c0_i32 = arith.constant 0 : i32
    %c0_i32_0 = arith.constant 0 : i32
    return %c0_i32, %arg0 : i32, i32
  }
}

</mosaic_0001>

<llo_original>
// kernel: tpu_custom_call.1
$region0: #{tpu_custom_call.1}
  #allocation0 [shape = 'u32[]', space=smem, size = 0x4, offset = 0x4, fixed_abs, tag = 'smem constant byte address 0x4 - core index']
  #allocation1 [shape = 'u32[144,128]{1,0:T(1,128)}', space=vmem, size = 0x12000, scoped, tag = 'internal scratch']
  %s0 = inlined_call_operand.vmem [shape: f32[4,512], index: 0, kind: input, shape index: {}]
  %s1 = inlined_call_operand.vmem [shape: f32[8,4], index: 1, kind: input, shape index: {}]
  %s2 = inlined_call_operand.vmem [shape: f32[8,1], index: 2, kind: input, shape index: {}]
  %s3 = inlined_call_operand.hbm [shape: f32[8,512], index: 3, kind: output, shape index: {}]
  %s4 = sld [smem:[#allocation0]]
  $region45: #{tpu_custom_call.1} parent=0
    _
  %s6 = ssub.s32 1, %s4
  %s7 = scalar_select 0, %s6, %s4
  $region1: #{tpu_custom_call.1} parent=0
    #allocation2 [shape = 'u8[16384]{0}', space=vmem, size = 0x4000, scoped, tag = 'output window, operand 0']
    #allocation3 [shape = 's32[2]{0}', space=sflag, size = 0x8, scoped, tag = 'scoped memory for tpu_custom_call.1']
    %8 = vsyncpa [#allocation3], 0
    %s9 = scalar_lea.sflag [#allocation3], 1
    %10 = vsyncpa %s9, 0
    loop: start=0, step=1, limit=4
    $region2: #{tpu_custom_call.1} parent=1 // loop_pre_header
      _
    $region3: #{tpu_custom_call.1} parent=1 // loop_header
      %s12 = sphi 0, %s16
      %p13 = scmp.ge.s32.totalorder %s12, 4
      %s22 = sphi 0, %s24
      %s25 = sphi 0, %s22
      %s26 = sphi 0, %s25
      %s42 = sphi 0, %s26
      %s46 = sphi 0, %s46
      %s48 = sphi 0, %s46
      %s49 = sphi 0, %s48
      %s63 = sphi 0, %s49
      %s67 = sphi 0, %s67
      %s69 = sphi 0, %s67
      %s70 = sphi 0, %s69
      %s84 = sphi 0, %s70
      %s90 = sphi 0, %s92
      %s93 = sphi 0, %s90
      %s94 = sphi 0, %s93
      %s110 = sphi 0, %s94
    $region4: #{tpu_custom_call.1} parent=1 // loop_header_branch
      %15 = sbr.rel (%p13) target = $region8
    $region5: #{tpu_custom_call.1} parent=1 // loop_body
      %s17 = ssub.s32 %s12, 1
      %s18 = ssub.s32 %s12, 2
      %s19 = sadd.s32 %s12, 1
      %s20 = ssub.s32 %s12, %s19
      %p21 = scmp.eq.s32.totalorder %s20, 0
      %s23 = sadd.s32 %s22, 1
      %s24 = scalar_select %p21, %s22, %s23
      %p27 = pneg %p21
      %p28 = scmp.eq.s32.totalorder %s12, 1
      %p29 = por %p27, %p28
      %p30 = scmp.ne.s32.totalorder %s22, %s25
      %p31 = scmp.eq.s32.totalorder %s12, 0
      %p32 = por %p30, %p31
      %p33 = scmp.ne.s32.totalorder %s22, %s25
      %p34 = scmp.eq.s32.totalorder %s17, 1
      %p35 = por %p33, %p34
      %p36 = scmp.ne.s32.totalorder %s25, %s26
      %p37 = scmp.eq.s32.totalorder %s17, 0
      %p38 = por %p36, %p37
      %p39 = scmp.ne.s32.totalorder %s25, %s26
      %p40 = scmp.eq.s32.totalorder %s18, 1
      %p41 = por %p39, %p40
      %p43 = scmp.ne.s32.totalorder %s26, %s42
      %p44 = scmp.eq.s32.totalorder %s18, 0
      %p45 = por %p43, %p44
      %s47 = sadd.s32 %s46, 1
      %p50 = scmp.eq.s32.totalorder %s12, 1
      %p51 = scmp.ne.s32.totalorder %s46, %s48
      %p52 = scmp.eq.s32.totalorder %s12, 0
      %p53 = por %p51, %p52
      %p54 = scmp.ne.s32.totalorder %s46, %s48
      %p55 = scmp.eq.s32.totalorder %s17, 1
      %p56 = por %p54, %p55
      %p57 = scmp.ne.s32.totalorder %s48, %s49
      %p58 = scmp.eq.s32.totalorder %s17, 0
      %p59 = por %p57, %p58
      %p60 = scmp.ne.s32.totalorder %s48, %s49
      %p61 = scmp.eq.s32.totalorder %s18, 1
      %p62 = por %p60, %p61
      %p64 = scmp.ne.s32.totalorder %s49, %s63
      %p65 = scmp.eq.s32.totalorder %s18, 0
      %p66 = por %p64, %p65
      %s68 = sadd.s32 %s67, 1
      %p71 = scmp.eq.s32.totalorder %s12, 1
      %p72 = scmp.ne.s32.totalorder %s67, %s69
      %p73 = scmp.eq.s32.totalorder %s12, 0
      %p74 = por %p72, %p73
      %p75 = scmp.ne.s32.totalorder %s67, %s69
      %p76 = scmp.eq.s32.totalorder %s17, 1
      %p77 = por %p75, %p76
      %p78 = scmp.ne.s32.totalorder %s69, %s70
      %p79 = scmp.eq.s32.totalorder %s17, 0
      %p80 = por %p78, %p79
      %p81 = scmp.ne.s32.totalorder %s69, %s70
      %p82 = scmp.eq.s32.totalorder %s18, 1
      %p83 = por %p81, %p82
      %p85 = scmp.ne.s32.totalorder %s70, %s84
      %p86 = scmp.eq.s32.totalorder %s18, 0
      %p87 = por %p85, %p86
      %s88 = ssub.s32 %s12, %s19
      %p89 = scmp.eq.s32.totalorder %s88, 0
      %s91 = sadd.s32 %s90, 1
      %s92 = scalar_select %p89, %s90, %s91
      %p95 = pneg %p89
      %p96 = scmp.eq.s32.totalorder %s12, 1
      %p97 = por %p95, %p96
      %p98 = scmp.ne.s32.totalorder %s90, %s93
      %p99 = scmp.eq.s32.totalorder %s12, 0
      %p100 = por %p98, %p99
      %p101 = scmp.ne.s32.totalorder %s90, %s93
      %p102 = scmp.eq.s32.totalorder %s17, 1
      %p103 = por %p101, %p102
      %p104 = scmp.ne.s32.totalorder %s93, %s94
      %p105 = scmp.eq.s32.totalorder %s17, 0
      %p106 = por %p104, %p105
      %p107 = scmp.ne.s32.totalorder %s93, %s94
      %p108 = scmp.eq.s32.totalorder %s18, 1
      %p109 = por %p107, %p108
      %p111 = scmp.ne.s32.totalorder %s94, %s110
      %p112 = scmp.eq.s32.totalorder %s18, 0
      %p113 = por %p111, %p112
      %p114 = scmp.le.s32.totalorder 1, %s12
      %p115 = scmp.lt.s32.totalorder %s12, 3
      %p116 = pnand %p114, %p115
      %p117 = pneg %p116
      // Predicated region
      $region9: #{tpu_custom_call.1} parent=5 // pred_check
        _
      $region10: #{tpu_custom_call.1} parent=5 // pred_check_branch
        %119 = sbr.rel (%p116) target = $region12
      $region11: #{tpu_custom_call.1} parent=5 // pred_region
        %s120 = ssub.s32 %s12, 1
        // Predicated region
        $region13: #{tpu_custom_call.1} parent=11 // pred_check
          %p121 = pneg %p59
        $region14: #{tpu_custom_call.1} parent=11 // pred_check_branch
          %123 = sbr.rel (%p121) target = $region16
        $region15: #{tpu_custom_call.1} parent=11 // pred_region
          _
        $region16: #{tpu_custom_call.1} parent=11 // pred_fallthru
          _
        // Predicated region
        $region17: #{tpu_custom_call.1} parent=11 // pred_check
          %p124 = pneg %p80
        $region18: #{tpu_custom_call.1} parent=11 // pred_check_branch
          %126 = sbr.rel (%p124) target = $region20
        $region19: #{tpu_custom_call.1} parent=11 // pred_region
          _
        $region20: #{tpu_custom_call.1} parent=11 // pred_fallthru
          _
      $region12: #{tpu_custom_call.1} parent=5 // pred_fallthru
        _
      %p127 = scmp.lt.s32.totalorder %s12, 2
      // Predicated region
      $region21: #{tpu_custom_call.1} parent=5 // pred_check
        %p128 = pneg %p127
      $region22: #{tpu_custom_call.1} parent=5 // pred_check_branch
        %130 = sbr.rel (%p128) target = $region24
      $region23: #{tpu_custom_call.1} parent=5 // pred_region
        // Predicated region
        $region25: #{tpu_custom_call.1} parent=23 // pred_check
          %p131 = pneg %p32
        $region26: #{tpu_custom_call.1} parent=23 // pred_check_branch
          %133 = sbr.rel (%p131) target = $region28
        $region27: #{tpu_custom_call.1} parent=23 // pred_region
          %s134 = smul.u32 2, %s12
          %p135 = scmp.lt.s32.totalorder %s134, 3
          %s136 = scalar_select %p135, %s134, 3
          %s137 = smul.addr %s136, 4
          %s138 = scalar_lea.vmem %s0, %s137
          %s139 = smul.u32 2, %s12
        $region28: #{tpu_custom_call.1} parent=23 // pred_fallthru
          _
      $region24: #{tpu_custom_call.1} parent=5 // pred_fallthru
        _
      %p140 = scmp.le.s32.totalorder 1, %s12
      %p141 = scmp.lt.s32.totalorder %s12, 3
      %p142 = pnand %p140, %p141
      %p143 = pneg %p142
      // Predicated region
      $region29: #{tpu_custom_call.1} parent=5 // pred_check
        _
      $region30: #{tpu_custom_call.1} parent=5 // pred_check_branch
        %145 = sbr.rel (%p142) target = $region32
      $region31: #{tpu_custom_call.1} parent=5 // pred_region
        %s146 = ssub.s32 %s12, 1
        %s147 = smul.u32 2, %s17
        %p148 = scmp.lt.s32.totalorder %s147, 3
        %s149 = scalar_select %p148, %s147, 3
        %s150 = smul.addr %s149, 4
        %s151 = scalar_lea.vmem %s0, %s150
        %p152 = pneg %p38
        %p153 = pneg %p35
        %p154 = pneg %p59
        %p155 = pneg %p56
        %p156 = pneg %p80
        %p157 = pneg %p77
        %p158 = pneg %p106
        %p159 = pneg %p103
        %s160 = sand.u32 %s93, 1
        %s161 = scalar_lea.sflag [#allocation3], %s160
        %s162 = sand.u32 %s93, 1
        %s163 = smul.addr %s162, 16
        %s164 = scalar_lea.vmem [#allocation2], %s163
        %s165 = smul.u32 2, %s17
        %p166 = scmp.lt.s32.totalorder %s165, 3
        %s167 = scalar_select %p166, %s165, 3
        %s168 = smul.addr %s167, 4
        %s169 = scalar_lea.vmem %s0, %s168
        %s170 = smul.u32 2, %s17
        %s171 = smul.u32 2, %s17
        %v172 = vld [vmem:[%s1] sm:$0xff]
        %v173 = vld [vmem:[%s169] sm:$0xff]
        %v174 = vld [vmem:[%s2] sm:$0xff]
        %176 = vset.pattern.permute.xlu0 0
        %177 = vperm.xlu0 %176, %v174
        %v178 = vpop.permute.xlu0 %177
        %v181 = vcombine.high %v173, %v173
        %vm182 = vcmask 31744
        %v184 = vsel %vm182, %v172, 0
        %vm186 = vcmask 1043456
        %v187 = vsel %vm186, %v173, 0
        %v189 = vsel %vm186, %v181, 0
        %191 = vmatprep.subr.mxu0 0.0
        %192 = vmatpush1.msra.mxu0 0.0
        %193 = vmatprep.subr.mxu0 0.0
        %194 = vmatpush1.msra.mxu0 0.0
        %195 = vmatprep.subr.mxu0 0.0
        %196 = vmatpush1.msra.mxu0 0.0
        %197 = vmatprep.subr.mxu0 0.0
        %198 = vmatpush1.msra.mxu0 0.0
        %199 = vmatprep.subr.mxu0 0.0
        %200 = vmatpush1.msra.mxu0 0.0
        %201 = vmatprep.subr.mxu0 0.0
        %202 = vmatpush1.msra.mxu0 0.0
        %203 = vmatprep.subr.mxu0 0.0
        %204 = vmatpush1.msra.mxu0 0.0
        %205 = vmatprep.subr.mxu0 0.0
        %206 = vmatpush1.msra.mxu0 0.0
        %207 = vmatprep.subr.mxu0 0.0
        %208 = vmatpush1.msra.mxu0 0.0
        %209 = vmatprep.subr.mxu0 0.0
        %210 = vmatpush1.msra.mxu0 0.0
        %211 = vmatprep.subr.mxu0 0.0
        %212 = vmatpush1.msra.mxu0 0.0
        %213 = vmatprep.subr.mxu0 0.0
        %214 = vmatpush1.msra.mxu0 0.0
        %215 = vmatprep.subr.mxu0 0.0
        %216 = vmatpush1.msra.mxu0 0.0
        %217 = vmatprep.subr.mxu0 0.0
        %218 = vmatpush1.msra.mxu0 0.0
        %219 = vmatprep.subr.mxu0 0.0
        %220 = vmatpush1.msra.mxu0 0.0
        %v221 = vand.u32 %v189, 4294901760
        %222 = vmatprep.subr.mxu0 %v221
        %v223 = vand.u32 %v187, 4294901760
        %224 = vmatpush1.msra.mxu0 %v223
        %225 = vmatprep.subr.mxu0 0.0
        %226 = vmatpush2.msra.mxu0 0.0
        %227 = vmatprep.subr.mxu0 0.0
        %228 = vmatpush2.msra.mxu0 0.0
        %229 = vmatprep.subr.mxu0 0.0
        %230 = vmatpush2.msra.mxu0 0.0
        %231 = vmatprep.subr.mxu0 0.0
        %232 = vmatpush2.msra.mxu0 0.0
        %233 = vmatprep.subr.mxu0 0.0
        %234 = vmatpush2.msra.mxu0 0.0
        %235 = vmatprep.subr.mxu0 0.0
        %236 = vmatpush2.msra.mxu0 0.0
        %237 = vmatprep.subr.mxu0 0.0
        %238 = vmatpush2.msra.mxu0 0.0
        %239 = vmatprep.subr.mxu0 0.0
        %240 = vmatpush2.msra.mxu0 0.0
        %241 = vmatprep.subr.mxu0 0.0
        %242 = vmatpush2.msra.mxu0 0.0
        %243 = vmatprep.subr.mxu0 0.0
        %244 = vmatpush2.msra.mxu0 0.0
        %245 = vmatprep.subr.mxu0 0.0
        %246 = vmatpush2.msra.mxu0 0.0
        %247 = vmatprep.subr.mxu0 0.0
        %248 = vmatpush2.msra.mxu0 0.0
        %249 = vmatprep.subr.mxu0 0.0
        %250 = vmatpush2.msra.mxu0 0.0
        %251 = vmatprep.subr.mxu0 0.0
        %252 = vmatpush2.msra.mxu0 0.0
        %253 = vmatprep.subr.mxu0 0.0
        %254 = vmatpush2.msra.mxu0 0.0
        %255 = vmatprep.subr.mxu0 0.0
        %256 = vmatpush2.msra.mxu0 0.0
        %257 = vmatprep.mubr.f32.mxu0 0.0
        %v258 = vand.u32 %v184, 4294901760
        %v259 = vsub.f32 %v184, %v258
        %v260 = vand.u32 %v259, 4294901760
        %v261 = vsub.f32 %v259, %v260
        %v262 = vand.u32 %v261, 4294901760
        %263 = vmatmul.mubr.f32.gmra.mxu0 %v262
        %v264 = vpop.f32.mrf.mxu0
        %v265 = vadd.f32 %v178, %v264
        %v266 = vpop.f32.mrf.mxu0
        %v267 = vadd.f32 %v178, %v266
        %268 = vdwg.mxu0
        %269 = vmatprep.subr.mxu0 0.0
        %270 = vmatpush1.msra.mxu0 0.0
        %271 = vmatprep.subr.mxu0 0.0
        %272 = vmatpush1.msra.mxu0 0.0
        %273 = vmatprep.subr.mxu0 0.0
        %274 = vmatpush1.msra.mxu0 0.0
        %275 = vmatprep.subr.mxu0 0.0
        %276 = vmatpush1.msra.mxu0 0.0
        %277 = vmatprep.subr.mxu0 0.0
        %278 = vmatpush1.msra.mxu0 0.0
        %279 = vmatprep.subr.mxu0 0.0
        %280 = vmatpush1.msra.mxu0 0.0
        %281 = vmatprep.subr.mxu0 0.0
        %282 = vmatpush1.msra.mxu0 0.0
        %283 = vmatprep.subr.mxu0 0.0
        %284 = vmatpush1.msra.mxu0 0.0
        %285 = vmatprep.subr.mxu0 0.0
        %286 = vmatpush1.msra.mxu0 0.0
        %287 = vmatprep.subr.mxu0 0.0
        %288 = vmatpush1.msra.mxu0 0.0
        %289 = vmatprep.subr.mxu0 0.0
        %290 = vmatpush1.msra.mxu0 0.0
        %291 = vmatprep.subr.mxu0 0.0
        %292 = vmatpush1.msra.mxu0 0.0
        %293 = vmatprep.subr.mxu0 0.0
        %294 = vmatpush1.msra.mxu0 0.0
        %295 = vmatprep.subr.mxu0 0.0
        %296 = vmatpush1.msra.mxu0 0.0
        %297 = vmatprep.subr.mxu0 0.0
        %298 = vmatpush1.msra.mxu0 0.0
        %v299 = vand.u32 %v189, 4294901760
        %v300 = vsub.f32 %v189, %v299
        %v301 = vand.u32 %v300, 4294901760
        %v302 = vsub.f32 %v300, %v301
        %v303 = vand.u32 %v302, 4294901760
        %304 = vmatprep.subr.mxu0 %v303
        %v305 = vand.u32 %v187, 4294901760
        %v306 = vsub.f32 %v187, %v305
        %v307 = vand.u32 %v306, 4294901760
        %v308 = vsub.f32 %v306, %v307
        %v309 = vand.u32 %v308, 4294901760
        %310 = vmatpush1.msra.mxu0 %v309
        %311 = vmatprep.subr.mxu0 0.0
        %312 = vmatpush2.msra.mxu0 0.0
        %313 = vmatprep.subr.mxu0 0.0
        %314 = vmatpush2.msra.mxu0 0.0
        %315 = vmatprep.subr.mxu0 0.0
        %316 = vmatpush2.msra.mxu0 0.0
        %317 = vmatprep.subr.mxu0 0.0
        %318 = vmatpush2.msra.mxu0 0.0
        %319 = vmatprep.subr.mxu0 0.0
        %320 = vmatpush2.msra.mxu0 0.0
        %321 = vmatprep.subr.mxu0 0.0
        %322 = vmatpush2.msra.mxu0 0.0
        %323 = vmatprep.subr.mxu0 0.0
        %324 = vmatpush2.msra.mxu0 0.0
        %325 = vmatprep.subr.mxu0 0.0
        %326 = vmatpush2.msra.mxu0 0.0
        %327 = vmatprep.subr.mxu0 0.0
        %328 = vmatpush2.msra.mxu0 0.0
        %329 = vmatprep.subr.mxu0 0.0
        %330 = vmatpush2.msra.mxu0 0.0
        %331 = vmatprep.subr.mxu0 0.0
        %332 = vmatpush2.msra.mxu0 0.0
        %333 = vmatprep.subr.mxu0 0.0
        %334 = vmatpush2.msra.mxu0 0.0
        %335 = vmatprep.subr.mxu0 0.0
        %336 = vmatpush2.msra.mxu0 0.0
        %337 = vmatprep.subr.mxu0 0.0
        %338 = vmatpush2.msra.mxu0 0.0
        %339 = vmatprep.subr.mxu0 0.0
        %340 = vmatpush2.msra.mxu0 0.0
        %341 = vmatprep.subr.mxu0 0.0
        %342 = vmatpush2.msra.mxu0 0.0
        %343 = vmatprep.mubr.f32.mxu0 0.0
        %v344 = vand.u32 %v184, 4294901760
        %345 = vmatmul.mubr.f32.gmra.mxu0 %v344
        %v346 = vpop.f32.mrf.mxu0
        %v347 = vadd.f32 %v265, %v346
        %v348 = vpop.f32.mrf.mxu0
        %v349 = vadd.f32 %v267, %v348
        %350 = vdwg.mxu0
        %351 = vmatprep.subr.mxu0 0.0
        %352 = vmatpush1.msra.mxu0 0.0
        %353 = vmatprep.subr.mxu0 0.0
        %354 = vmatpush1.msra.mxu0 0.0
        %355 = vmatprep.subr.mxu0 0.0
        %356 = vmatpush1.msra.mxu0 0.0
        %357 = vmatprep.subr.mxu0 0.0
        %358 = vmatpush1.msra.mxu0 0.0
        %359 = vmatprep.subr.mxu0 0.0
        %360 = vmatpush1.msra.mxu0 0.0
        %361 = vmatprep.subr.mxu0 0.0
        %362 = vmatpush1.msra.mxu0 0.0
        %363 = vmatprep.subr.mxu0 0.0
        %364 = vmatpush1.msra.mxu0 0.0
        %365 = vmatprep.subr.mxu0 0.0
        %366 = vmatpush1.msra.mxu0 0.0
        %367 = vmatprep.subr.mxu0 0.0
        %368 = vmatpush1.msra.mxu0 0.0
        %369 = vmatprep.subr.mxu0 0.0
        %370 = vmatpush1.msra.mxu0 0.0
        %371 = vmatprep.subr.mxu0 0.0
        %372 = vmatpush1.msra.mxu0 0.0
        %373 = vmatprep.subr.mxu0 0.0
        %374 = vmatpush1.msra.mxu0 0.0
        %375 = vmatprep.subr.mxu0 0.0
        %376 = vmatpush1.msra.mxu0 0.0
        %377 = vmatprep.subr.mxu0 0.0
        %378 = vmatpush1.msra.mxu0 0.0
        %379 = vmatprep.subr.mxu0 0.0
        %380 = vmatpush1.msra.mxu0 0.0
        %v381 = vand.u32 %v189, 4294901760
        %v382 = vsub.f32 %v189, %v381
        %383 = vmatprep.subr.mxu0 %v382
        %v384 = vand.u32 %v187, 4294901760
        %v385 = vsub.f32 %v187, %v384
        %386 = vmatpush1.msra.mxu0 %v385
        %387 = vmatprep.subr.mxu0 0.0
        %388 = vmatpush2.msra.mxu0 0.0
        %389 = vmatprep.subr.mxu0 0.0
        %390 = vmatpush2.msra.mxu0 0.0
        %391 = vmatprep.subr.mxu0 0.0
        %392 = vmatpush2.msra.mxu0 0.0
        %393 = vmatprep.subr.mxu0 0.0
        %394 = vmatpush2.msra.mxu0 0.0
        %395 = vmatprep.subr.mxu0 0.0
        %396 = vmatpush2.msra.mxu0 0.0
        %397 = vmatprep.subr.mxu0 0.0
        %398 = vmatpush2.msra.mxu0 0.0
        %399 = vmatprep.subr.mxu0 0.0
        %400 = vmatpush2.msra.mxu0 0.0
        %401 = vmatprep.subr.mxu0 0.0
        %402 = vmatpush2.msra.mxu0 0.0
        %403 = vmatprep.subr.mxu0 0.0
        %404 = vmatpush2.msra.mxu0 0.0
        %405 = vmatprep.subr.mxu0 0.0
        %406 = vmatpush2.msra.mxu0 0.0
        %407 = vmatprep.subr.mxu0 0.0
        %408 = vmatpush2.msra.mxu0 0.0
        %409 = vmatprep.subr.mxu0 0.0
        %410 = vmatpush2.msra.mxu0 0.0
        %411 = vmatprep.subr.mxu0 0.0
        %412 = vmatpush2.msra.mxu0 0.0
        %413 = vmatprep.subr.mxu0 0.0
        %414 = vmatpush2.msra.mxu0 0.0
        %415 = vmatprep.subr.mxu0 0.0
        %416 = vmatpush2.msra.mxu0 0.0
        %417 = vmatprep.subr.mxu0 0.0
        %418 = vmatpush2.msra.mxu0 0.0
        %419 = vmatprep.mubr.f32.mxu0 0.0
        %v420 = vand.u32 %v184, 4294901760
        %v421 = vsub.f32 %v184, %v420
        %422 = vmatmul.mubr.f32.gmra.mxu0 %v421
        %v423 = vpop.f32.mrf.mxu0
        %v424 = vadd.f32 %v347, %v423
        %v425 = vpop.f32.mrf.mxu0
        %v426 = vadd.f32 %v349, %v425
        %427 = vdwg.mxu0
        %428 = vmatprep.subr.mxu0 0.0
        %429 = vmatpush1.msra.mxu0 0.0
        %430 = vmatprep.subr.mxu0 0.0
        %431 = vmatpush1.msra.mxu0 0.0
        %432 = vmatprep.subr.mxu0 0.0
        %433 = vmatpush1.msra.mxu0 0.0
        %434 = vmatprep.subr.mxu0 0.0
        %435 = vmatpush1.msra.mxu0 0.0
        %436 = vmatprep.subr.mxu0 0.0
        %437 = vmatpush1.msra.mxu0 0.0
        %438 = vmatprep.subr.mxu0 0.0
        %439 = vmatpush1.msra.mxu0 0.0
        %440 = vmatprep.subr.mxu0 0.0
        %441 = vmatpush1.msra.mxu0 0.0
        %442 = vmatprep.subr.mxu0 0.0
        %443 = vmatpush1.msra.mxu0 0.0
        %444 = vmatprep.subr.mxu0 0.0
        %445 = vmatpush1.msra.mxu0 0.0
        %446 = vmatprep.subr.mxu0 0.0
        %447 = vmatpush1.msra.mxu0 0.0
        %448 = vmatprep.subr.mxu0 0.0
        %449 = vmatpush1.msra.mxu0 0.0
        %450 = vmatprep.subr.mxu0 0.0
        %451 = vmatpush1.msra.mxu0 0.0
        %452 = vmatprep.subr.mxu0 0.0
        %453 = vmatpush1.msra.mxu0 0.0
        %454 = vmatprep.subr.mxu0 0.0
        %455 = vmatpush1.msra.mxu0 0.0
        %456 = vmatprep.subr.mxu0 0.0
        %457 = vmatpush1.msra.mxu0 0.0
        %v458 = vand.u32 %v189, 4294901760
        %459 = vmatprep.subr.mxu0 %v458
        %v460 = vand.u32 %v187, 4294901760
        %461 = vmatpush1.msra.mxu0 %v460
        %462 = vmatprep.subr.mxu0 0.0
        %463 = vmatpush2.msra.mxu0 0.0
        %464 = vmatprep.subr.mxu0 0.0
        %465 = vmatpush2.msra.mxu0 0.0
        %466 = vmatprep.subr.mxu0 0.0
        %467 = vmatpush2.msra.mxu0 0.0
        %468 = vmatprep.subr.mxu0 0.0
        %469 = vmatpush2.msra.mxu0 0.0
        %470 = vmatprep.subr.mxu0 0.0
        %471 = vmatpush2.msra.mxu0 0.0
        %472 = vmatprep.subr.mxu0 0.0
        %473 = vmatpush2.msra.mxu0 0.0
        %474 = vmatprep.subr.mxu0 0.0
        %475 = vmatpush2.msra.mxu0 0.0
        %476 = vmatprep.subr.mxu0 0.0
        %477 = vmatpush2.msra.mxu0 0.0
        %478 = vmatprep.subr.mxu0 0.0
        %479 = vmatpush2.msra.mxu0 0.0
        %480 = vmatprep.subr.mxu0 0.0
        %481 = vmatpush2.msra.mxu0 0.0
        %482 = vmatprep.subr.mxu0 0.0
        %483 = vmatpush2.msra.mxu0 0.0
        %484 = vmatprep.subr.mxu0 0.0
        %485 = vmatpush2.msra.mxu0 0.0
        %486 = vmatprep.subr.mxu0 0.0
        %487 = vmatpush2.msra.mxu0 0.0
        %488 = vmatprep.subr.mxu0 0.0
        %489 = vmatpush2.msra.mxu0 0.0
        %490 = vmatprep.subr.mxu0 0.0
        %491 = vmatpush2.msra.mxu0 0.0
        %492 = vmatprep.subr.mxu0 0.0
        %493 = vmatpush2.msra.mxu0 0.0
        %494 = vmatprep.mubr.f32.mxu0 0.0
        %v495 = vand.u32 %v184, 4294901760
        %v496 = vsub.f32 %v184, %v495
        %v497 = vand.u32 %v496, 4294901760
        %498 = vmatmul.mubr.f32.gmra.mxu0 %v497
        %v499 = vpop.f32.mrf.mxu0
        %v500 = vadd.f32 %v424, %v499
        %v501 = vpop.f32.mrf.mxu0
        %v502 = vadd.f32 %v426, %v501
        %503 = vdwg.mxu0
        %504 = vmatprep.subr.mxu0 0.0
        %505 = vmatpush1.msra.mxu0 0.0
        %506 = vmatprep.subr.mxu0 0.0
        %507 = vmatpush1.msra.mxu0 0.0
        %508 = vmatprep.subr.mxu0 0.0
        %509 = vmatpush1.msra.mxu0 0.0
        %510 = vmatprep.subr.mxu0 0.0
        %511 = vmatpush1.msra.mxu0 0.0
        %512 = vmatprep.subr.mxu0 0.0
        %513 = vmatpush1.msra.mxu0 0.0
        %514 = vmatprep.subr.mxu0 0.0
        %515 = vmatpush1.msra.mxu0 0.0
        %516 = vmatprep.subr.mxu0 0.0
        %517 = vmatpush1.msra.mxu0 0.0
        %518 = vmatprep.subr.mxu0 0.0
        %519 = vmatpush1.msra.mxu0 0.0
        %520 = vmatprep.subr.mxu0 0.0
        %521 = vmatpush1.msra.mxu0 0.0
        %522 = vmatprep.subr.mxu0 0.0
        %523 = vmatpush1.msra.mxu0 0.0
        %524 = vmatprep.subr.mxu0 0.0
        %525 = vmatpush1.msra.mxu0 0.0
        %526 = vmatprep.subr.mxu0 0.0
        %527 = vmatpush1.msra.mxu0 0.0
        %528 = vmatprep.subr.mxu0 0.0
        %529 = vmatpush1.msra.mxu0 0.0
        %530 = vmatprep.subr.mxu0 0.0
        %531 = vmatpush1.msra.mxu0 0.0
        %532 = vmatprep.subr.mxu0 0.0
        %533 = vmatpush1.msra.mxu0 0.0
        %v534 = vand.u32 %v189, 4294901760
        %v535 = vsub.f32 %v189, %v534
        %v536 = vand.u32 %v535, 4294901760
        %537 = vmatprep.subr.mxu0 %v536
        %v538 = vand.u32 %v187, 4294901760
        %v539 = vsub.f32 %v187, %v538
        %v540 = vand.u32 %v539, 4294901760
        %541 = vmatpush1.msra.mxu0 %v540
        %542 = vmatprep.subr.mxu0 0.0
        %543 = vmatpush2.msra.mxu0 0.0
        %544 = vmatprep.subr.mxu0 0.0
        %545 = vmatpush2.msra.mxu0 0.0
        %546 = vmatprep.subr.mxu0 0.0
        %547 = vmatpush2.msra.mxu0 0.0
        %548 = vmatprep.subr.mxu0 0.0
        %549 = vmatpush2.msra.mxu0 0.0
        %550 = vmatprep.subr.mxu0 0.0
        %551 = vmatpush2.msra.mxu0 0.0
        %552 = vmatprep.subr.mxu0 0.0
        %553 = vmatpush2.msra.mxu0 0.0
        %554 = vmatprep.subr.mxu0 0.0
        %555 = vmatpush2.msra.mxu0 0.0
        %556 = vmatprep.subr.mxu0 0.0
        %557 = vmatpush2.msra.mxu0 0.0
        %558 = vmatprep.subr.mxu0 0.0
        %559 = vmatpush2.msra.mxu0 0.0
        %560 = vmatprep.subr.mxu0 0.0
        %561 = vmatpush2.msra.mxu0 0.0
        %562 = vmatprep.subr.mxu0 0.0
        %563 = vmatpush2.msra.mxu0 0.0
        %564 = vmatprep.subr.mxu0 0.0
        %565 = vmatpush2.msra.mxu0 0.0
        %566 = vmatprep.subr.mxu0 0.0
        %567 = vmatpush2.msra.mxu0 0.0
        %568 = vmatprep.subr.mxu0 0.0
        %569 = vmatpush2.msra.mxu0 0.0
        %570 = vmatprep.subr.mxu0 0.0
        %571 = vmatpush2.msra.mxu0 0.0
        %572 = vmatprep.subr.mxu0 0.0
        %573 = vmatpush2.msra.mxu0 0.0
        %574 = vmatprep.mubr.f32.mxu0 0.0
        %v575 = vand.u32 %v184, 4294901760
        %576 = vmatmul.mubr.f32.gmra.mxu0 %v575
        %v577 = vpop.f32.mrf.mxu0
        %v578 = vadd.f32 %v500, %v577
        %v579 = vpop.f32.mrf.mxu0
        %v580 = vadd.f32 %v502, %v579
        %581 = vdwg.mxu0
        %582 = vmatprep.subr.mxu0 0.0
        %583 = vmatpush1.msra.mxu0 0.0
        %584 = vmatprep.subr.mxu0 0.0
        %585 = vmatpush1.msra.mxu0 0.0
        %586 = vmatprep.subr.mxu0 0.0
        %587 = vmatpush1.msra.mxu0 0.0
        %588 = vmatprep.subr.mxu0 0.0
        %589 = vmatpush1.msra.mxu0 0.0
        %590 = vmatprep.subr.mxu0 0.0
        %591 = vmatpush1.msra.mxu0 0.0
        %592 = vmatprep.subr.mxu0 0.0
        %593 = vmatpush1.msra.mxu0 0.0
        %594 = vmatprep.subr.mxu0 0.0
        %595 = vmatpush1.msra.mxu0 0.0
        %596 = vmatprep.subr.mxu0 0.0
        %597 = vmatpush1.msra.mxu0 0.0
        %598 = vmatprep.subr.mxu0 0.0
        %599 = vmatpush1.msra.mxu0 0.0
        %600 = vmatprep.subr.mxu0 0.0
        %601 = vmatpush1.msra.mxu0 0.0
        %602 = vmatprep.subr.mxu0 0.0
        %603 = vmatpush1.msra.mxu0 0.0
        %604 = vmatprep.subr.mxu0 0.0
        %605 = vmatpush1.msra.mxu0 0.0
        %606 = vmatprep.subr.mxu0 0.0
        %607 = vmatpush1.msra.mxu0 0.0
        %608 = vmatprep.subr.mxu0 0.0
        %609 = vmatpush1.msra.mxu0 0.0
        %610 = vmatprep.subr.mxu0 0.0
        %611 = vmatpush1.msra.mxu0 0.0
        %v612 = vand.u32 %v189, 4294901760
        %613 = vmatprep.subr.mxu0 %v612
        %v614 = vand.u32 %v187, 4294901760
        %615 = vmatpush1.msra.mxu0 %v614
        %616 = vmatprep.subr.mxu0 0.0
        %617 = vmatpush2.msra.mxu0 0.0
        %618 = vmatprep.subr.mxu0 0.0
        %619 = vmatpush2.msra.mxu0 0.0
        %620 = vmatprep.subr.mxu0 0.0
        %621 = vmatpush2.msra.mxu0 0.0
        %622 = vmatprep.subr.mxu0 0.0
        %623 = vmatpush2.msra.mxu0 0.0
        %624 = vmatprep.subr.mxu0 0.0
        %625 = vmatpush2.msra.mxu0 0.0
        %626 = vmatprep.subr.mxu0 0.0
        %627 = vmatpush2.msra.mxu0 0.0
        %628 = vmatprep.subr.mxu0 0.0
        %629 = vmatpush2.msra.mxu0 0.0
        %630 = vmatprep.subr.mxu0 0.0
        %631 = vmatpush2.msra.mxu0 0.0
        %632 = vmatprep.subr.mxu0 0.0
        %633 = vmatpush2.msra.mxu0 0.0
        %634 = vmatprep.subr.mxu0 0.0
        %635 = vmatpush2.msra.mxu0 0.0
        %636 = vmatprep.subr.mxu0 0.0
        %637 = vmatpush2.msra.mxu0 0.0
        %638 = vmatprep.subr.mxu0 0.0
        %639 = vmatpush2.msra.mxu0 0.0
        %640 = vmatprep.subr.mxu0 0.0
        %641 = vmatpush2.msra.mxu0 0.0
        %642 = vmatprep.subr.mxu0 0.0
        %643 = vmatpush2.msra.mxu0 0.0
        %644 = vmatprep.subr.mxu0 0.0
        %645 = vmatpush2.msra.mxu0 0.0
        %646 = vmatprep.subr.mxu0 0.0
        %647 = vmatpush2.msra.mxu0 0.0
        %648 = vmatprep.mubr.f32.mxu0 0.0
        %v649 = vand.u32 %v184, 4294901760
        %650 = vmatmul.mubr.f32.gmra.mxu0 %v649
        %v651 = vpop.f32.mrf.mxu0
        %v652 = vadd.f32 %v578, %v651
        %v653 = vpop.f32.mrf.mxu0
        %v654 = vadd.f32 %v580, %v653
        %655 = vdwg.mxu0
        %v656 = vsub.f32 0.0, %v652
        %v657 = vsub.f32 0.0, %v654
        %v658 = vmul.f32 %v656, 1.442695
        %v659 = vpow.pop %v658
        %v660 = vmul.f32 %v657, 1.442695
        %v661 = vpow.pop %v660
        %v662 = vadd.f32 %v659, 1.0
        %v663 = vadd.f32 %v661, 1.0
        %v664 = vrcp.pop %v662
        %v665 = vmul.f32 1.0, %v664
        %v666 = vrcp.pop %v663
        %v667 = vmul.f32 1.0, %v666
        %v668 = vmul.f32 %v652, %v665
        %v669 = vmul.f32 %v654, %v667
        %670 = vst [vmem:[%s164] sm:$0xff] %v668
        %671 = vst [vmem:[%s164 + $0x8] sm:$0xff] %v669
        %s672 = sand.u32 %s93, 1
        %s673 = scalar_lea.sflag [#allocation3], %s672
        %s674 = sand.u32 %s93, 1
        %s675 = smul.addr %s674, 16
        %s676 = scalar_lea.vmem [#allocation2], %s675
        // Predicated region
        $region33: #{tpu_custom_call.1} parent=31 // pred_check
          %p677 = pneg %p103
        $region34: #{tpu_custom_call.1} parent=31 // pred_check_branch
          %679 = sbr.rel (%p677) target = $region36
        $region35: #{tpu_custom_call.1} parent=31 // pred_region
          %s680 = smul.u32 2, %s17
          %s682 = ssub.s32 256, 256
          %683 = vsyncadd %s673, %s682
          %s684 = smul.addr %s680, 128
          %s685 = scalar_lea.hbm %s3, %s684
          %s687 = sshll.u32 %s676, 4
          %s688 = int_to_ptr.vmem [resolvable:$true] %s687
          %690 = dma.vmem_to_hbm [thread:$0]  %s688, 256, %s685, %s673
        $region36: #{tpu_custom_call.1} parent=31 // pred_fallthru
          _
      $region32: #{tpu_custom_call.1} parent=5 // pred_fallthru
        _
      %p691 = scmp.le.s32.totalorder 2, %s12
      // Predicated region
      $region37: #{tpu_custom_call.1} parent=5 // pred_check
        %p692 = pneg %p691
      $region38: #{tpu_custom_call.1} parent=5 // pred_check_branch
        %694 = sbr.rel (%p692) target = $region40
      $region39: #{tpu_custom_call.1} parent=5 // pred_region
        %s695 = ssub.s32 %s12, 2
        // Predicated region
        $region41: #{tpu_custom_call.1} parent=39 // pred_check
          %p696 = pneg %p109
        $region42: #{tpu_custom_call.1} parent=39 // pred_check_branch
          %698 = sbr.rel (%p696) target = $region44
        $region43: #{tpu_custom_call.1} parent=39 // pred_region
          %s699 = sand.u32 %s94, 1
          %s700 = scalar_lea.sflag [#allocation3], %s699
          %s701 = sand.u32 %s94, 1
          %s702 = smul.addr %s701, 16
          %s703 = scalar_lea.vmem [#allocation2], %s702
          %704 = dma.done %s700, 256
        $region44: #{tpu_custom_call.1} parent=39 // pred_fallthru
          _
      $region40: #{tpu_custom_call.1} parent=5 // pred_fallthru
        _
    $region6: #{tpu_custom_call.1} parent=1 // loop_footer
      %s16 = sadd.s32 1, %s12
    $region7: #{tpu_custom_call.1} parent=1 // loop_footer_branch
      %11 = sbr.rel target = $region3
    $region8: #{tpu_custom_call.1} parent=1 // loop_exit
      _
    %705 = vsyncpa [#allocation3], 1
    %s706 = scalar_lea.sflag [#allocation3], 1
    %707 = vsyncpa %s706, 1

</llo_original>
